<compile_context>
chip_gen: v6e
topology: v6e:2x2x1
jax: 0.10.0
libtpu: 0.0.40
codegen_flags: <defaults>
</compile_context>

<pallas_src>
import math

import jax
import jax.numpy as jnp
from jax.experimental import pallas as pl
from jax.experimental.pallas import tpu as pltpu


# ----------------------------- Pallas kernel ------------------------------ #
def mlp_classifier_kernel(x_ref, w_ref, b_ref, logsm_ref, logits_ref):
    # eval-mode dropout on the input is the identity.
    z = jnp.dot(x_ref[...], w_ref[...], preferred_element_type=jnp.float32)
    z = z + b_ref[...]                      # bias broadcast (1, C) -> (TM, C)
    logits_ref[...] = z                     # raw logits (narrow C columns)

    # numerically stable log_softmax over the class axis (all f32)
    m = jnp.max(z, axis=1, keepdims=True)
    s = z - m
    lse = jnp.log(jnp.sum(jnp.exp(s), axis=1, keepdims=True))
    logsm_ref[...] = s - lse


# ----------------------------- wrapper / glue ------------------------------ #
def _round_up(a, m):
    return ((a + m - 1) // m) * m


def mlp_classifier_forward(x, w, b, *, tm=512, cast_inputs_bf16=False):
    """x: (N, nfeat), w: (nfeat, nclass), b: (nclass,).

    Returns (log_softmax(logits, axis=1), logits), both (N, nclass) f32.
    """
    N, F = x.shape
    C = w.shape[1]

    # Row tile: one block when N <= tm (fewest grid steps -> best on v5e's
    # single TC); tm rows per step otherwise (grid >= 2 -> shards across the
    # two TensorCores on v7x via dimension_semantics below).
    TM = _round_up(min(tm, N), 8)
    grid = (pl.cdiv(N, TM),)

    in_dtype = jnp.bfloat16 if cast_inputs_bf16 else jnp.float32
    x_in = x.astype(in_dtype)
    w_in = w.astype(in_dtype)           # ideally cast once at model-setup time
    b_in = b.astype(jnp.float32).reshape(1, C)

    # Explicit VMEM budget: double-buffered input/output blocks at their
    # lane/sublane-padded sizes, plus headroom for kernel intermediates.
    in_esize = 2 if cast_inputs_bf16 else 4
    def _blk_bytes(rows, cols, esize):
        return _round_up(rows, 8) * _round_up(cols, 128) * esize
    footprint = 2 * (
        _blk_bytes(TM, F, in_esize)          # x block
        + _blk_bytes(F, C, in_esize)         # weight (grid-invariant)
        + _blk_bytes(1, C, 4)                # bias
        + 2 * _blk_bytes(TM, C, 4)           # two f32 output blocks
    )
    vmem_limit = min(max(int(1.5 * footprint) + (2 << 20), 16 << 20), 64 << 20)

    logsm, logits = pl.pallas_call(
        mlp_classifier_kernel,
        out_shape=(
            jax.ShapeDtypeStruct((N, C), jnp.float32),   # log_softmax
            jax.ShapeDtypeStruct((N, C), jnp.float32),   # raw logits
        ),
        grid=grid,
        in_specs=[
            pl.BlockSpec((TM, F), lambda i: (i, 0)),     # row block of x
            pl.BlockSpec((F, C), lambda i: (0, 0)),      # full weight
            pl.BlockSpec((1, C), lambda i: (0, 0)),      # full bias
        ],
        out_specs=(
            pl.BlockSpec((TM, C), lambda i: (i, 0)),
            pl.BlockSpec((TM, C), lambda i: (i, 0)),
        ),
        compiler_params=pltpu.CompilerParams(
            dimension_semantics=("parallel",),           # row blocks independent
            vmem_limit_bytes=vmem_limit,
        ),
    )(x_in, w_in, b_in)

    return logsm, logits


# ----------------------------- plain-JAX reference ------------------------- #
def jax_reference(x, w, b):
    logits = x @ w + b
    return jax.nn.log_softmax(logits, axis=1), logits


if __name__ == "__main__":
    # Small deterministic config consistent with the module:
    # batch N=64 samples, nfeat=32 features, nclass=10 classes.
    N, NFEAT, NCLASS = 64, 32, 10

    key = jax.random.PRNGKey(0)
    k_x, k_w, k_b = jax.random.split(key, 3)

    x = jax.random.normal(k_x, (N, NFEAT), dtype=jnp.float32)

    # mimic the PyTorch init: kaiming_uniform_(mode='fan_out', a=sqrt(5)) on an
    # (in, out) weight reduces to U(-1/sqrt(in), 1/sqrt(in));
    # bias: U(-1/sqrt(out), 1/sqrt(out)).
    bw = 1.0 / math.sqrt(NFEAT)
    w = jax.random.uniform(k_w, (NFEAT, NCLASS), minval=-bw, maxval=bw,
                           dtype=jnp.float32)
    bb = 1.0 / math.sqrt(NCLASS)
    b = jax.random.uniform(k_b, (NCLASS,), minval=-bb, maxval=bb,
                           dtype=jnp.float32)

    # Default tm=512 -> single grid step at this demo size (N=64).
    logsm, logits = mlp_classifier_forward(x, w, b)
    logsm, logits = jax.block_until_ready((logsm, logits))

    ref_logsm, ref_logits = jax_reference(x, w, b)
    assert logsm.shape == (N, NCLASS) and logits.shape == (N, NCLASS)
    assert jnp.allclose(logits, ref_logits, atol=1e-4, rtol=1e-4), \
        "logits mismatch vs JAX reference"
    assert jnp.allclose(logsm, ref_logsm, atol=1e-4, rtol=1e-4), \
        "log_softmax mismatch vs JAX reference"

    print("KERNEL_OK")
</pallas_src>

<mosaic_0001>
module attributes {stable_mosaic.version = 11 : i64} {
  func.func @mlp_classifier_kernel(%arg0: i32, %arg1: memref<64x32xf32, #tpu.memory_space<vmem>>, %arg2: memref<32x10xf32, #tpu.memory_space<vmem>>, %arg3: memref<1x10xf32, #tpu.memory_space<vmem>>, %arg4: memref<64x10xf32, #tpu.memory_space<vmem>>, %arg5: memref<64x10xf32, #tpu.memory_space<vmem>>) attributes {dimension_semantics = [#tpu.dimension_semantics<parallel>], iteration_bounds = array<i64: 1>, scalar_prefetch = 0 : i64, scratch_operands = 0 : i64, tpu.core_type = #tpu.core_type<tc>, window_params = [{transform_indices = @transform_0, window_bounds = array<i64: 64, 32>}, {pipeline_mode = #tpu.pipeline_mode<synchronous>, transform_indices = @transform_1, window_bounds = array<i64: 32, 10>}, {pipeline_mode = #tpu.pipeline_mode<synchronous>, transform_indices = @transform_2, window_bounds = array<i64: 1, 10>}, {transform_indices = @transform_3, window_bounds = array<i64: 64, 10>}, {transform_indices = @transform_4, window_bounds = array<i64: 64, 10>}]} {
    %c0 = arith.constant 0 : index
    %c0_0 = arith.constant 0 : index
    %0 = vector.load %arg1[%c0, %c0_0] : memref<64x32xf32, #tpu.memory_space<vmem>>, vector<64x32xf32>
    %c0_1 = arith.constant 0 : index
    %c0_2 = arith.constant 0 : index
    %1 = vector.load %arg2[%c0_1, %c0_2] : memref<32x10xf32, #tpu.memory_space<vmem>>, vector<32x10xf32>
    %cst = arith.constant dense<0.000000e+00> : vector<64x10xf32>
    %2 = tpu.matmul %0, %1, %cst {dimension_numbers = #tpu.dot_dimension_numbers<[1], [0], [0], [1], [0, 0, 1, 1], [], []>} : vector<64x32xf32>, vector<32x10xf32>, vector<64x10xf32> -> vector<64x10xf32>
    %c0_3 = arith.constant 0 : index
    %c0_4 = arith.constant 0 : index
    %3 = vector.load %arg3[%c0_3, %c0_4] : memref<1x10xf32, #tpu.memory_space<vmem>>, vector<1x10xf32>
    %4 = vector.broadcast %3 : vector<1x10xf32> to vector<64x10xf32>
    %5 = arith.addf %2, %4 : vector<64x10xf32>
    %c0_5 = arith.constant 0 : index
    %c0_6 = arith.constant 0 : index
    %6 = vector.load %arg5[%c0_5, %c0_6] : memref<64x10xf32, #tpu.memory_space<vmem>>, vector<64x10xf32>
    tpu.vector_store %arg5[%c0_5, %c0_6], %5 {strides = array<i32>} : memref<64x10xf32, #tpu.memory_space<vmem>>, vector<64x10xf32>,
    %cst_7 = arith.constant dense<0xFF800000> : vector<64xf32>
    %7 = vector.multi_reduction <maximumf>, %5, %cst_7 [1] : vector<64x10xf32> to vector<64xf32>
    %8 = vector.shape_cast %7 : vector<64xf32> to vector<64x1xf32>
    %9 = vector.broadcast %8 : vector<64x1xf32> to vector<64x10xf32>
    %10 = arith.subf %5, %9 : vector<64x10xf32>
    %11 = math.exp %10 : vector<64x10xf32>
    %cst_8 = arith.constant dense<0.000000e+00> : vector<64xf32>
    %12 = vector.multi_reduction <add>, %11, %cst_8 [1] : vector<64x10xf32> to vector<64xf32>
    %13 = vector.shape_cast %12 : vector<64xf32> to vector<64x1xf32>
    %14 = math.log %13 : vector<64x1xf32>
    %15 = vector.broadcast %14 : vector<64x1xf32> to vector<64x10xf32>
    %16 = arith.subf %10, %15 : vector<64x10xf32>
    %c0_9 = arith.constant 0 : index
    %c0_10 = arith.constant 0 : index
    %17 = vector.load %arg4[%c0_9, %c0_10] : memref<64x10xf32, #tpu.memory_space<vmem>>, vector<64x10xf32>
    tpu.vector_store %arg4[%c0_9, %c0_10], %16 {strides = array<i32>} : memref<64x10xf32, #tpu.memory_space<vmem>>, vector<64x10xf32>,
    return
  }
  func.func @transform_0(%arg0: i32) -> (i32, i32) {
    %c0_i32 = arith.constant 0 : i32
    %c0_i32_0 = arith.constant 0 : i32
    return %arg0, %c0_i32 : i32, i32
  }
  func.func @transform_1(%arg0: i32) -> (i32, i32) {
    %c0_i32 = arith.constant 0 : i32
    %c0_i32_0 = arith.constant 0 : i32
    %c0_i32_1 = arith.constant 0 : i32
    return %c0_i32, %c0_i32_0 : i32, i32
  }
  func.func @transform_2(%arg0: i32) -> (i32, i32) {
    %c0_i32 = arith.constant 0 : i32
    %c0_i32_0 = arith.constant 0 : i32
    %c0_i32_1 = arith.constant 0 : i32
    return %c0_i32, %c0_i32_0 : i32, i32
  }
  func.func @transform_3(%arg0: i32) -> (i32, i32) {
    %c0_i32 = arith.constant 0 : i32
    %c0_i32_0 = arith.constant 0 : i32
    return %arg0, %c0_i32 : i32, i32
  }
  func.func @transform_4(%arg0: i32) -> (i32, i32) {
    %c0_i32 = arith.constant 0 : i32
    %c0_i32_0 = arith.constant 0 : i32
    return %arg0, %c0_i32 : i32, i32
  }
}

</mosaic_0001>

<llo_original>
// kernel: tpu_custom_call.1
$region0: #{tpu_custom_call.1}
  #allocation0 [shape = 'u32[]', space=smem, size = 0x4, offset = 0x4, fixed_abs, tag = 'smem constant byte address 0x4 - core index']
  #allocation1 [shape = 'u32[144,128]{1,0:T(1,128)}', space=vmem, size = 0x12000, scoped, tag = 'internal scratch']
  %s0 = inlined_call_operand.vmem [shape: f32[64,32], index: 0, kind: input, shape index: {}]
  %s1 = inlined_call_operand.vmem [shape: f32[32,10], index: 1, kind: input, shape index: {}]
  %s2 = inlined_call_operand.vmem [shape: f32[1,10], index: 2, kind: input, shape index: {}]
  %s3 = inlined_call_operand.vmem [shape: f32[64,10], index: 3, kind: output, shape index: {0}]
  %s4 = inlined_call_operand.vmem [shape: f32[64,10], index: 4, kind: output, shape index: {1}]
  %5 = xla_tuple %s3, %s4
  %s6 = sld [smem:[#allocation0]]
  $region30: #{tpu_custom_call.1} parent=0
    _
  %s8 = ssub.s32 1, %s6
  %s9 = scalar_select 0, %s8, %s6
  // Predicated region
  $region2: #{tpu_custom_call.1} parent=0 // pred_check
    _
  $region3: #{tpu_custom_call.1} parent=0 // pred_check_branch
    %11 = sbr.rel (0) target = $region5
  $region4: #{tpu_custom_call.1} parent=0 // pred_region
    _
  $region5: #{tpu_custom_call.1} parent=0 // pred_fallthru
    _
  // Predicated region
  $region6: #{tpu_custom_call.1} parent=0 // pred_check
    _
  $region7: #{tpu_custom_call.1} parent=0 // pred_check_branch
    %13 = sbr.rel (0) target = $region9
  $region8: #{tpu_custom_call.1} parent=0 // pred_region
    _
  $region9: #{tpu_custom_call.1} parent=0 // pred_fallthru
    _
  // Predicated region
  $region10: #{tpu_custom_call.1} parent=0 // pred_check
    _
  $region11: #{tpu_custom_call.1} parent=0 // pred_check_branch
    %15 = sbr.rel (0) target = $region13
  $region12: #{tpu_custom_call.1} parent=0 // pred_region
    _
  $region13: #{tpu_custom_call.1} parent=0 // pred_fallthru
    _
  %v16 = vld [vmem:[%s0] sm:$0xff]
  %v17 = vld [vmem:[%s0 + $0x8] sm:$0xff]
  %v18 = vld [vmem:[%s0 + $0x10] sm:$0xff]
  %v19 = vld [vmem:[%s0 + $0x18] sm:$0xff]
  %v20 = vld [vmem:[%s0 + $0x20] sm:$0xff]
  %v21 = vld [vmem:[%s0 + $0x28] sm:$0xff]
  %v22 = vld [vmem:[%s0 + $0x30] sm:$0xff]
  %v23 = vld [vmem:[%s0 + $0x38] sm:$0xff]
  %v24 = vld [vmem:[%s1] sm:$0xff]
  %v25 = vld [vmem:[%s1 + $0x8] sm:$0xff]
  %v26 = vld [vmem:[%s1 + $0x10] sm:$0xff]
  %v27 = vld [vmem:[%s1 + $0x18] sm:$0xff]
  %v28 = vld [vmem:[%s2] sm:$0x1]
  %v30 = vlaneseq
  %v31 = vshrl.u32 %v30, 7
  %v32 = vsub.s32 0, %v31
  %v33 = vrot.slane %v28, %v32
  %vm35 = vcmask 261120
  %v37 = vsel %vm35, %v16, 0
  %v40 = vsel %vm35, %v17, 0
  %v43 = vsel %vm35, %v18, 0
  %v46 = vsel %vm35, %v19, 0
  %v49 = vsel %vm35, %v20, 0
  %v52 = vsel %vm35, %v21, 0
  %v55 = vsel %vm35, %v22, 0
  %v58 = vsel %vm35, %v23, 0
  %60 = vmatprep.subr.mxu0 0.0
  %61 = vmatpush1.msra.mxu0 0.0
  %62 = vmatprep.subr.mxu0 0.0
  %63 = vmatpush1.msra.mxu0 0.0
  %64 = vmatprep.subr.mxu0 0.0
  %65 = vmatpush1.msra.mxu0 0.0
  %66 = vmatprep.subr.mxu0 0.0
  %67 = vmatpush1.msra.mxu0 0.0
  %68 = vmatprep.subr.mxu0 0.0
  %69 = vmatpush1.msra.mxu0 0.0
  %70 = vmatprep.subr.mxu0 0.0
  %71 = vmatpush1.msra.mxu0 0.0
  %72 = vmatprep.subr.mxu0 0.0
  %73 = vmatpush1.msra.mxu0 0.0
  %74 = vmatprep.subr.mxu0 0.0
  %75 = vmatpush1.msra.mxu0 0.0
  %76 = vmatprep.subr.mxu0 0.0
  %77 = vmatpush1.msra.mxu0 0.0
  %78 = vmatprep.subr.mxu0 0.0
  %79 = vmatpush1.msra.mxu0 0.0
  %80 = vmatprep.subr.mxu0 0.0
  %81 = vmatpush1.msra.mxu0 0.0
  %82 = vmatprep.subr.mxu0 0.0
  %83 = vmatpush1.msra.mxu0 0.0
  %84 = vmatprep.subr.mxu0 0.0
  %85 = vmatpush1.msra.mxu0 %v27
  %86 = vmatprep.subr.mxu0 0.0
  %87 = vmatpush1.msra.mxu0 %v26
  %88 = vmatprep.subr.mxu0 0.0
  %89 = vmatpush1.msra.mxu0 %v25
  %90 = vmatprep.subr.mxu0 0.0
  %91 = vmatpush1.msra.mxu0 %v24
  %92 = vmatprep.subr.mxu0 0.0
  %93 = vmatpush2.msra.mxu0 0.0
  %94 = vmatprep.subr.mxu0 0.0
  %95 = vmatpush2.msra.mxu0 0.0
  %96 = vmatprep.subr.mxu0 0.0
  %97 = vmatpush2.msra.mxu0 0.0
  %98 = vmatprep.subr.mxu0 0.0
  %99 = vmatpush2.msra.mxu0 0.0
  %100 = vmatprep.subr.mxu0 0.0
  %101 = vmatpush2.msra.mxu0 0.0
  %102 = vmatprep.subr.mxu0 0.0
  %103 = vmatpush2.msra.mxu0 0.0
  %104 = vmatprep.subr.mxu0 0.0
  %105 = vmatpush2.msra.mxu0 0.0
  %106 = vmatprep.subr.mxu0 0.0
  %107 = vmatpush2.msra.mxu0 0.0
  %108 = vmatprep.subr.mxu0 0.0
  %109 = vmatpush2.msra.mxu0 0.0
  %110 = vmatprep.subr.mxu0 0.0
  %111 = vmatpush2.msra.mxu0 0.0
  %112 = vmatprep.subr.mxu0 0.0
  %113 = vmatpush2.msra.mxu0 0.0
  %114 = vmatprep.subr.mxu0 0.0
  %115 = vmatpush2.msra.mxu0 0.0
  %116 = vmatprep.subr.mxu0 0.0
  %117 = vmatpush2.msra.mxu0 0.0
  %118 = vmatprep.subr.mxu0 0.0
  %119 = vmatpush2.msra.mxu0 0.0
  %120 = vmatprep.subr.mxu0 0.0
  %121 = vmatpush2.msra.mxu0 0.0
  %122 = vmatprep.subr.mxu0 0.0
  %123 = vmatpush2.msra.mxu0 0.0
  %124 = vmatprep.mubr.f32.mxu0 0.0
  %125 = vmatmul.mubr.f32.gmra.mxu0 %v37
  %v126 = vpop.f32.mrf.mxu0
  %v127 = vadd.f32 %v33, %v126
  %v128 = vpop.f32.mrf.mxu0
  %129 = vmatprep.mubr.f32.mxu0 0.0
  %130 = vmatmul.mubr.f32.gmra.mxu0 %v40
  %v131 = vpop.f32.mrf.mxu0
  %v132 = vadd.f32 %v33, %v131
  %v133 = vpop.f32.mrf.mxu0
  %134 = vmatprep.mubr.f32.mxu0 0.0
  %135 = vmatmul.mubr.f32.gmra.mxu0 %v43
  %v136 = vpop.f32.mrf.mxu0
  %v137 = vadd.f32 %v33, %v136
  %v138 = vpop.f32.mrf.mxu0
  %139 = vmatprep.mubr.f32.mxu0 0.0
  %140 = vmatmul.mubr.f32.gmra.mxu0 %v46
  %v141 = vpop.f32.mrf.mxu0
  %v142 = vadd.f32 %v33, %v141
  %v143 = vpop.f32.mrf.mxu0
  %144 = vmatprep.mubr.f32.mxu0 0.0
  %145 = vmatmul.mubr.f32.gmra.mxu0 %v49
  %v146 = vpop.f32.mrf.mxu0
  %v147 = vadd.f32 %v33, %v146
  %v148 = vpop.f32.mrf.mxu0
  %149 = vmatprep.mubr.f32.mxu0 0.0
  %150 = vmatmul.mubr.f32.gmra.mxu0 %v52
  %v151 = vpop.f32.mrf.mxu0
  %v152 = vadd.f32 %v33, %v151
  %v153 = vpop.f32.mrf.mxu0
  %154 = vmatprep.mubr.f32.mxu0 0.0
  %155 = vmatmul.mubr.f32.gmra.mxu0 %v55
  %v156 = vpop.f32.mrf.mxu0
  %v157 = vadd.f32 %v33, %v156
  %v158 = vpop.f32.mrf.mxu0
  %159 = vmatprep.mubr.f32.mxu0 0.0
  %160 = vmatmul.mubr.f32.gmra.mxu0 %v58
  %v161 = vpop.f32.mrf.mxu0
  %v162 = vadd.f32 %v33, %v161
  %v163 = vpop.f32.mrf.mxu0
  %164 = vdwg.mxu0
  %vm165 = vcmask 80896
  %166 = vst.msk [vmem:[%s4] sm:$0xff] %vm165, %v127
  %167 = vst.msk [vmem:[%s4 + $0x8] sm:$0xff] %vm165, %v132
  %168 = vst.msk [vmem:[%s4 + $0x10] sm:$0xff] %vm165, %v137
  %169 = vst.msk [vmem:[%s4 + $0x18] sm:$0xff] %vm165, %v142
  %170 = vst.msk [vmem:[%s4 + $0x20] sm:$0xff] %vm165, %v147
  %171 = vst.msk [vmem:[%s4 + $0x28] sm:$0xff] %vm165, %v152
  %172 = vst.msk [vmem:[%s4 + $0x30] sm:$0xff] %vm165, %v157
  %173 = vst.msk [vmem:[%s4 + $0x38] sm:$0xff] %vm165, %v162
  %v174 = vsel %vm165, %v127, -inf
  %175 = vmax.xlane.f32.xlu0 %v174
  %v176 = vpop.xlane.xlu0 %175
  %v177 = vsel %vm165, %v132, -inf
  %178 = vmax.xlane.f32.xlu0 %v177
  %v179 = vpop.xlane.xlu0 %178
  %v180 = vsel %vm165, %v137, -inf
  %181 = vmax.xlane.f32.xlu0 %v180
  %v182 = vpop.xlane.xlu0 %181
  %v183 = vsel %vm165, %v142, -inf
  %184 = vmax.xlane.f32.xlu0 %v183
  %v185 = vpop.xlane.xlu0 %184
  %v186 = vsel %vm165, %v147, -inf
  %187 = vmax.xlane.f32.xlu0 %v186
  %v188 = vpop.xlane.xlu0 %187
  %v189 = vsel %vm165, %v152, -inf
  %190 = vmax.xlane.f32.xlu0 %v189
  %v191 = vpop.xlane.xlu0 %190
  %v192 = vsel %vm165, %v157, -inf
  %193 = vmax.xlane.f32.xlu0 %v192
  %v194 = vpop.xlane.xlu0 %193
  %v195 = vsel %vm165, %v162, -inf
  %196 = vmax.xlane.f32.xlu0 %v195
  %v197 = vpop.xlane.xlu0 %196
  %v198 = vsub.f32 %v127, %v176
  %v199 = vsub.f32 %v132, %v179
  %v200 = vsub.f32 %v137, %v182
  %v201 = vsub.f32 %v142, %v185
  %v202 = vsub.f32 %v147, %v188
  %v203 = vsub.f32 %v152, %v191
  %v204 = vsub.f32 %v157, %v194
  %v205 = vsub.f32 %v162, %v197
  %v206 = vmul.f32 %v198, 1.442695
  %v207 = vpow.pop %v206
  %v208 = vmul.f32 %v199, 1.442695
  %v209 = vpow.pop %v208
  %v210 = vmul.f32 %v200, 1.442695
  %v211 = vpow.pop %v210
  %v212 = vmul.f32 %v201, 1.442695
  %v213 = vpow.pop %v212
  %v214 = vmul.f32 %v202, 1.442695
  %v215 = vpow.pop %v214
  %v216 = vmul.f32 %v203, 1.442695
  %v217 = vpow.pop %v216
  %v218 = vmul.f32 %v204, 1.442695
  %v219 = vpow.pop %v218
  %v220 = vmul.f32 %v205, 1.442695
  %v221 = vpow.pop %v220
  %v222 = vsel %vm165, %v207, 0.0
  %223 = vadd.xlane.f32.xlu0 %v222
  %v224 = vpop.xlane.xlu0 %223
  %v225 = vsel %vm165, %v209, 0.0
  %226 = vadd.xlane.f32.xlu0 %v225
  %v227 = vpop.xlane.xlu0 %226
  %v228 = vsel %vm165, %v211, 0.0
  %229 = vadd.xlane.f32.xlu0 %v228
  %v230 = vpop.xlane.xlu0 %229
  %v231 = vsel %vm165, %v213, 0.0
  %232 = vadd.xlane.f32.xlu0 %v231
  %v233 = vpop.xlane.xlu0 %232
  %v234 = vsel %vm165, %v215, 0.0
  %235 = vadd.xlane.f32.xlu0 %v234
  %v236 = vpop.xlane.xlu0 %235
  %v237 = vsel %vm165, %v217, 0.0
  %238 = vadd.xlane.f32.xlu0 %v237
  %v239 = vpop.xlane.xlu0 %238
  %v240 = vsel %vm165, %v219, 0.0
  %241 = vadd.xlane.f32.xlu0 %v240
  %v242 = vpop.xlane.xlu0 %241
  %v243 = vsel %vm165, %v221, 0.0
  %244 = vadd.xlane.f32.xlu0 %v243
  %v245 = vpop.xlane.xlu0 %244
  %v246 = vlog2.pop %v224
  %v247 = vmul.f32 %v246, 0.6931472
  %v248 = vlog2.pop %v227
  %v249 = vmul.f32 %v248, 0.6931472
  %v250 = vlog2.pop %v230
  %v251 = vmul.f32 %v250, 0.6931472
  %v252 = vlog2.pop %v233
  %v253 = vmul.f32 %v252, 0.6931472
  %v254 = vlog2.pop %v236
  %v255 = vmul.f32 %v254, 0.6931472
  %v256 = vlog2.pop %v239
  %v257 = vmul.f32 %v256, 0.6931472
  %v258 = vlog2.pop %v242
  %v259 = vmul.f32 %v258, 0.6931472
  %v260 = vlog2.pop %v245
  %v261 = vmul.f32 %v260, 0.6931472
  %v262 = vsub.f32 %v198, %v247
  %v263 = vsub.f32 %v199, %v249
  %v264 = vsub.f32 %v200, %v251
  %v265 = vsub.f32 %v201, %v253
  %v266 = vsub.f32 %v202, %v255
  %v267 = vsub.f32 %v203, %v257
  %v268 = vsub.f32 %v204, %v259
  %v269 = vsub.f32 %v205, %v261
  %270 = vst.msk [vmem:[%s3] sm:$0xff] %vm165, %v262
  %271 = vst.msk [vmem:[%s3 + $0x8] sm:$0xff] %vm165, %v263
  %272 = vst.msk [vmem:[%s3 + $0x10] sm:$0xff] %vm165, %v264
  %273 = vst.msk [vmem:[%s3 + $0x18] sm:$0xff] %vm165, %v265
  %274 = vst.msk [vmem:[%s3 + $0x20] sm:$0xff] %vm165, %v266
  %275 = vst.msk [vmem:[%s3 + $0x28] sm:$0xff] %vm165, %v267
  %276 = vst.msk [vmem:[%s3 + $0x30] sm:$0xff] %vm165, %v268
  %277 = vst.msk [vmem:[%s3 + $0x38] sm:$0xff] %vm165, %v269
  // Predicated region
  $region14: #{tpu_custom_call.1} parent=0 // pred_check
    _
  $region15: #{tpu_custom_call.1} parent=0 // pred_check_branch
    %279 = sbr.rel (0) target = $region17
  $region16: #{tpu_custom_call.1} parent=0 // pred_region
    _
  $region17: #{tpu_custom_call.1} parent=0 // pred_fallthru
    _
  // Predicated region
  $region18: #{tpu_custom_call.1} parent=0 // pred_check
    _
  $region19: #{tpu_custom_call.1} parent=0 // pred_check_branch
    %281 = sbr.rel (0) target = $region21
  $region20: #{tpu_custom_call.1} parent=0 // pred_region
    _
  $region21: #{tpu_custom_call.1} parent=0 // pred_fallthru
    _
  // Predicated region
  $region22: #{tpu_custom_call.1} parent=0 // pred_check
    _
  $region23: #{tpu_custom_call.1} parent=0 // pred_check_branch
    %283 = sbr.rel (0) target = $region25
  $region24: #{tpu_custom_call.1} parent=0 // pred_region
    _
  $region25: #{tpu_custom_call.1} parent=0 // pred_fallthru
    _
  // Predicated region
  $region26: #{tpu_custom_call.1} parent=0 // pred_check
    _
  $region27: #{tpu_custom_call.1} parent=0 // pred_check_branch
    %285 = sbr.rel (0) target = $region29
  $region28: #{tpu_custom_call.1} parent=0 // pred_region
    _
  $region29: #{tpu_custom_call.1} parent=0 // pred_fallthru
    _

</llo_original>
